<compile_context>
chip_gen: v5e
topology: v5e:2x2
jax: 0.10.0
libtpu: 0.0.40
codegen_flags: <defaults>
</compile_context>

<pallas_src>
import functools

import jax
import jax.numpy as jnp
from jax import lax
from jax.experimental import pallas as pl
from jax.experimental.pallas import tpu as pltpu

NUM_CLASSES = 2
SMOOTHING = 0.25

_LANES = 128
# Default rows (of 128 samples each) per grid step: 4096 rows = 512K samples,
# ~6 MiB of logits+targets moved per step.
_DEFAULT_BLOCK_ROWS = 4096


def _round_up(x, m):
    return (x + m - 1) // m * m


def _label_smoothing_kernel(x_ref, t_ref, o_ref, acc_ref, *, num_classes,
                            smoothing, confidence, n_valid, block_rows,
                            blocks_per_half):
    p = pl.program_id(0)   # 2-way split (megacore-parallel on v7x)
    i = pl.program_id(1)   # sequential reduction over row blocks

    @pl.when(i == 0)
    def _init():
        acc_ref[...] = jnp.zeros_like(acc_ref)

    # One dense (block_rows, 128) plane per class; cast once to f32 so exp/log
    # stay on the f32 EUP path.
    rows = [x_ref[c].astype(jnp.float32) for c in range(num_classes)]
    t = t_ref[...]                               # (block_rows, 128) int32

    # Per-sample logsumexp across the class planes: pure elementwise VPU/EUP
    # work, no cross-lane reductions.
    m = rows[0]
    for r in rows[1:]:
        m = jnp.maximum(m, r)
    se = jnp.exp(rows[0] - m)
    for r in rows[1:]:
        se = se + jnp.exp(r - m)
    lse = m + jnp.log(se)

    # x[target] via elementwise selects (no one-hot) and sum_c x[c].
    x_t = rows[0]
    sum_x = rows[0]
    for c in range(1, num_classes):
        sum_x = sum_x + rows[c]
        x_t = jnp.where(t == c, rows[c], x_t)

    # loss_i = sum_c -true_dist[c] * log_softmax(x)_c
    #        = lse - confidence * x[t] - (s/C) * sum_c x[c]   (sum(true_dist)=1)
    loss = lse - confidence * x_t - (smoothing / num_classes) * sum_x

    # Nominal row-block handled by this step.  The index_maps clamp
    # out-of-range block indices (duplicated last block), but masking is
    # decided by the *nominal* sample range, so duplicates contribute zero.
    block = p * blocks_per_half + i
    start = block * (block_rows * _LANES)
    needs_mask = start + block_rows * _LANES > n_valid

    @pl.when(jnp.logical_not(needs_mask))
    def _accumulate():
        # Steady state: plain lane-dense VPU accumulate, no mask overhead.
        acc_ref[...] += loss

    @pl.when(needs_mask)
    def _accumulate_masked():
        # Only ragged / duplicated blocks pay for iota + compare + select.
        r_idx = lax.broadcasted_iota(jnp.int32, loss.shape, 0)
        l_idx = lax.broadcasted_iota(jnp.int32, loss.shape, 1)
        sample = start + r_idx * _LANES + l_idx
        acc_ref[...] += jnp.where(sample < n_valid, loss, 0.0)

    # One cross-lane reduction + lane-dense store per half, on the last step.
    @pl.when(i == pl.num_programs(1) - 1)
    def _finalize():
        o_ref[...] = jnp.zeros_like(o_ref) + jnp.sum(acc_ref[...])


def label_smoothing_loss(inputs, targets, *, num_classes=NUM_CLASSES,
                         smoothing=SMOOTHING, block_rows=_DEFAULT_BLOCK_ROWS):
    """inputs: (N, C) float logits, targets: (N,) int class ids -> scalar."""
    n, c = inputs.shape
    assert c == num_classes
    assert targets.shape == (n,)

    # ---- XLA-side relayout to class-major (C, R, 128). ----------------------
    # TODO(synk): the transpose below is one extra HBM pass over the logits;
    # have the producer emit class-major (C, N) logits (or land an in-kernel
    # lane de-interleave) to remove it.
    n_pad = _round_up(n, _LANES)
    x = inputs
    t = targets.astype(jnp.int32)
    if n_pad != n:
        # Pad only up to the next lane multiple (<=127 samples). There is no
        # padding to a tile multiple: ragged blocks are masked in-kernel.
        x = jnp.pad(x, ((0, n_pad - n), (0, 0)))
        t = jnp.pad(t, ((0, n_pad - n),))
    r = n_pad // _LANES
    x_crl = jnp.transpose(x).reshape(num_classes, r, _LANES)   # (C, R, 128)
    t_rl = t.reshape(r, _LANES)                                # (R, 128)

    # ---- Tiling. -------------------------------------------------------------
    # Row block: the full array if it fits, otherwise a multiple of 8 sublanes.
    if r <= block_rows:
        tr = r
    else:
        tr = max(8, (block_rows // 8) * 8)
    num_blocks = -(-r // tr)                 # total row blocks
    blocks_per_half = -(-num_blocks // 2)    # per "parallel" half (v7x: per TC)

    def x_index(p, i):
        return (0, jnp.minimum(p * blocks_per_half + i, num_blocks - 1), 0)

    def t_index(p, i):
        return (jnp.minimum(p * blocks_per_half + i, num_blocks - 1), 0)

    kernel = functools.partial(
        _label_smoothing_kernel,
        num_classes=num_classes,
        smoothing=smoothing,
        confidence=1.0 - smoothing,
        n_valid=n,              # NOTE: static -> recompiles per distinct batch size
        block_rows=tr,
        blocks_per_half=blocks_per_half,
    )

    out = pl.pallas_call(
        kernel,
        out_shape=jax.ShapeDtypeStruct((2, 1, _LANES), jnp.float32),
        grid_spec=pltpu.PrefetchScalarGridSpec(
            num_scalar_prefetch=0,
            grid=(2, blocks_per_half),
            in_specs=[
                pl.BlockSpec((num_classes, tr, _LANES), x_index),  # logits
                pl.BlockSpec((tr, _LANES), t_index),               # targets
            ],
            out_specs=pl.BlockSpec((1, 1, _LANES), lambda p, i: (p, 0, 0)),
            scratch_shapes=[pltpu.VMEM((tr, _LANES), jnp.float32)],  # accumulator
        ),
        compiler_params=pltpu.CompilerParams(
            # Leading axis: independent halves (split across v7x's two cores);
            # trailing axis: sequential reduction into the resident accumulator.
            dimension_semantics=("parallel", "arbitrary"),
            vmem_limit_bytes=32 * 1024 * 1024,
        ),
    )(x_crl, t_rl)

    # Combine the two per-half partial sums and take the mean.
    return (out[0, 0, 0] + out[1, 0, 0]) / n


def _reference_loss(inputs, targets, num_classes=NUM_CLASSES,
                    smoothing=SMOOTHING):
    confidence = 1.0 - smoothing
    one_hot = jax.nn.one_hot(targets, num_classes, dtype=jnp.float32)
    true_dist = one_hot * confidence + smoothing / num_classes
    log_probs = jax.nn.log_softmax(inputs.astype(jnp.float32), axis=1)
    return jnp.mean(jnp.sum(-true_dist * log_probs, axis=1))


if __name__ == "__main__":
    key = jax.random.PRNGKey(0)
    k_x, k_t, k_x2, k_t2 = jax.random.split(key, 4)

    # Small case matching the original module's usage (N=8, C=2).
    batch = 8
    inputs = jax.random.normal(k_x, (batch, NUM_CLASSES), dtype=jnp.float32)
    targets = jax.random.randint(k_t, (batch,), 0, NUM_CLASSES, dtype=jnp.int32)
    loss = label_smoothing_loss(inputs, targets)
    jax.block_until_ready(loss)
    ref = _reference_loss(inputs, targets)
    assert jnp.allclose(loss, ref, atol=1e-5, rtol=1e-5), (loss, ref)

    # Larger ragged batch with a forced-small row block to exercise multi-step
    # accumulation, the 2-way grid split with an odd number of row blocks
    # (clamped duplicate block), and the gated ragged-tail mask.
    batch2 = 5000
    inputs2 = jax.random.normal(k_x2, (batch2, NUM_CLASSES), dtype=jnp.float32)
    targets2 = jax.random.randint(k_t2, (batch2,), 0, NUM_CLASSES,
                                  dtype=jnp.int32)
    loss2 = label_smoothing_loss(inputs2, targets2, block_rows=8)
    jax.block_until_ready(loss2)
    ref2 = _reference_loss(inputs2, targets2)
    assert jnp.allclose(loss2, ref2, atol=1e-5, rtol=1e-5), (loss2, ref2)

    print("KERNEL_OK")
</pallas_src>

<mosaic_0001>
module attributes {stable_mosaic.version = 11 : i64} {
  func.func @_label_smoothing_kernel(%arg0: i32, %arg1: i32, %arg2: memref<2x1x128xf32, #tpu.memory_space<vmem>>, %arg3: memref<1x128xi32, #tpu.memory_space<vmem>>, %arg4: memref<1x1x128xf32, #tpu.memory_space<vmem>>, %arg5: memref<1x128xf32, #tpu.memory_space<vmem>>) attributes {dimension_semantics = [#tpu.dimension_semantics<parallel>, #tpu.dimension_semantics<arbitrary>], iteration_bounds = array<i64: 2, 1>, scalar_prefetch = 0 : i64, scratch_operands = 1 : i64, tpu.core_type = #tpu.core_type<tc>, window_params = [{transform_indices = @transform_0, window_bounds = array<i64: 2, 1, 128>}, {transform_indices = @transform_1, window_bounds = array<i64: 1, 128>}, {transform_indices = @transform_2, window_bounds = array<i64: 1, 1, 128>}]} {
    %c0_i32 = arith.constant 0 : i32
    %0 = arith.cmpi eq, %arg1, %c0_i32 : i32
    %1 = arith.extui %0 : i1 to i32
    %c0_i32_0 = arith.constant 0 : i32
    %2 = arith.cmpi ne, %1, %c0_i32_0 : i32
    scf.if %2 {
      %cst_14 = arith.constant 0.000000e+00 : f32
      %39 = vector.broadcast %cst_14 : f32 to vector<1x128xf32>
      %c0_15 = arith.constant 0 : index
      %c0_16 = arith.constant 0 : index
      %40 = vector.load %arg5[%c0_15, %c0_16] : memref<1x128xf32, #tpu.memory_space<vmem>>, vector<1x128xf32>
      tpu.vector_store %arg5[%c0_15, %c0_16], %39 {strides = array<i32>} : memref<1x128xf32, #tpu.memory_space<vmem>>, vector<1x128xf32>,
    } else {
    }
    %c0 = arith.constant 0 : index
    %c0_1 = arith.constant 0 : index
    %c0_2 = arith.constant 0 : index
    %3 = vector.load %arg2[%c0, %c0_1, %c0_2] : memref<2x1x128xf32, #tpu.memory_space<vmem>>, vector<1x1x128xf32>
    %4 = vector.shape_cast %3 : vector<1x1x128xf32> to vector<1x128xf32>
    %c1 = arith.constant 1 : index
    %c0_3 = arith.constant 0 : index
    %c0_4 = arith.constant 0 : index
    %5 = vector.load %arg2[%c1, %c0_3, %c0_4] : memref<2x1x128xf32, #tpu.memory_space<vmem>>, vector<1x1x128xf32>
    %6 = vector.shape_cast %5 : vector<1x1x128xf32> to vector<1x128xf32>
    %c0_5 = arith.constant 0 : index
    %c0_6 = arith.constant 0 : index
    %7 = vector.load %arg3[%c0_5, %c0_6] : memref<1x128xi32, #tpu.memory_space<vmem>>, vector<1x128xi32>
    %8 = arith.maximumf %4, %6 : vector<1x128xf32>
    %9 = arith.subf %4, %8 : vector<1x128xf32>
    %10 = math.exp %9 : vector<1x128xf32>
    %11 = arith.subf %6, %8 : vector<1x128xf32>
    %12 = math.exp %11 : vector<1x128xf32>
    %13 = arith.addf %10, %12 : vector<1x128xf32>
    %14 = math.log %13 : vector<1x128xf32>
    %15 = arith.addf %8, %14 : vector<1x128xf32>
    %16 = arith.addf %4, %6 : vector<1x128xf32>
    %c1_i32 = arith.constant 1 : i32
    %17 = vector.broadcast %c1_i32 : i32 to vector<1x128xi32>
    %18 = arith.cmpi eq, %7, %17 : vector<1x128xi32>
    %19 = arith.select %18, %6, %4 : vector<1x128xi1>, vector<1x128xf32>
    %cst = arith.constant 7.500000e-01 : f32
    %20 = vector.broadcast %cst : f32 to vector<1x128xf32>
    %21 = arith.mulf %20, %19 : vector<1x128xf32>
    %22 = arith.subf %15, %21 : vector<1x128xf32>
    %cst_7 = arith.constant 1.250000e-01 : f32
    %23 = vector.broadcast %cst_7 : f32 to vector<1x128xf32>
    %24 = arith.mulf %23, %16 : vector<1x128xf32>
    %25 = arith.subf %22, %24 : vector<1x128xf32>
    %c1_i32_8 = arith.constant 1 : i32
    %26 = arith.muli %arg0, %c1_i32_8 : i32
    %27 = arith.addi %26, %arg1 : i32
    %c128_i32 = arith.constant 128 : i32
    %28 = arith.muli %27, %c128_i32 : i32
    %c128_i32_9 = arith.constant 128 : i32
    %29 = arith.addi %28, %c128_i32_9 : i32
    %c8_i32 = arith.constant 8 : i32
    %30 = arith.cmpi sgt, %29, %c8_i32 : i32
    %true = arith.constant true
    %31 = arith.xori %30, %true : i1
    %32 = arith.extui %31 : i1 to i32
    %c0_i32_10 = arith.constant 0 : i32
    %33 = arith.cmpi ne, %32, %c0_i32_10 : i32
    scf.if %33 {
      %c0_14 = arith.constant 0 : index
      %c0_15 = arith.constant 0 : index
      %39 = vector.load %arg5[%c0_14, %c0_15] : memref<1x128xf32, #tpu.memory_space<vmem>>, vector<1x128xf32>
      %40 = arith.addf %39, %25 : vector<1x128xf32>
      %c0_16 = arith.constant 0 : index
      %c0_17 = arith.constant 0 : index
      %41 = vector.load %arg5[%c0_16, %c0_17] : memref<1x128xf32, #tpu.memory_space<vmem>>, vector<1x128xf32>
      tpu.vector_store %arg5[%c0_16, %c0_17], %40 {strides = array<i32>} : memref<1x128xf32, #tpu.memory_space<vmem>>, vector<1x128xf32>,
    } else {
    }
    %34 = arith.extui %30 : i1 to i32
    %c0_i32_11 = arith.constant 0 : i32
    %35 = arith.cmpi ne, %34, %c0_i32_11 : i32
    scf.if %35 {
      %39 = tpu.iota {dimensions = array<i32: 0>} : vector<1x128xi32>
      %40 = tpu.iota {dimensions = array<i32: 1>} : vector<1x128xi32>
      %c128_i32_14 = arith.constant 128 : i32
      %41 = vector.broadcast %c128_i32_14 : i32 to vector<1x128xi32>
      %42 = arith.muli %39, %41 : vector<1x128xi32>
      %43 = vector.broadcast %28 : i32 to vector<1x128xi32>
      %44 = arith.addi %43, %42 : vector<1x128xi32>
      %45 = arith.addi %44, %40 : vector<1x128xi32>
      %c0_15 = arith.constant 0 : index
      %c0_16 = arith.constant 0 : index
      %46 = vector.load %arg5[%c0_15, %c0_16] : memref<1x128xf32, #tpu.memory_space<vmem>>, vector<1x128xf32>
      %c8_i32_17 = arith.constant 8 : i32
      %47 = vector.broadcast %c8_i32_17 : i32 to vector<1x128xi32>
      %48 = arith.cmpi slt, %45, %47 : vector<1x128xi32>
      %cst_18 = arith.constant 0.000000e+00 : f32
      %49 = vector.broadcast %cst_18 : f32 to vector<1x128xf32>
      %50 = arith.select %48, %25, %49 : vector<1x128xi1>, vector<1x128xf32>
      %51 = arith.addf %46, %50 : vector<1x128xf32>
      %c0_19 = arith.constant 0 : index
      %c0_20 = arith.constant 0 : index
      %52 = vector.load %arg5[%c0_19, %c0_20] : memref<1x128xf32, #tpu.memory_space<vmem>>, vector<1x128xf32>
      tpu.vector_store %arg5[%c0_19, %c0_20], %51 {strides = array<i32>} : memref<1x128xf32, #tpu.memory_space<vmem>>, vector<1x128xf32>,
    } else {
    }
    %c0_i32_12 = arith.constant 0 : i32
    %36 = arith.cmpi eq, %arg1, %c0_i32_12 : i32
    %37 = arith.extui %36 : i1 to i32
    %c0_i32_13 = arith.constant 0 : i32
    %38 = arith.cmpi ne, %37, %c0_i32_13 : i32
    scf.if %38 {
      %cst_14 = arith.constant 0.000000e+00 : f32
      %39 = vector.broadcast %cst_14 : f32 to vector<1x1x128xf32>
      %c0_15 = arith.constant 0 : index
      %c0_16 = arith.constant 0 : index
      %40 = vector.load %arg5[%c0_15, %c0_16] : memref<1x128xf32, #tpu.memory_space<vmem>>, vector<1x128xf32>
      %41 = vector.shape_cast %40 : vector<1x128xf32> to vector<1x1x128xf32>
      %cst_17 = arith.constant dense<0.000000e+00> : vector<1xf32>
      %42 = vector.multi_reduction <add>, %41, %cst_17 [1, 2] : vector<1x1x128xf32> to vector<1xf32>
      %43 = vector.shape_cast %42 : vector<1xf32> to vector<1x1x1xf32>
      %44 = vector.extract %43[0, 0, 0] : f32 from vector<1x1x1xf32>
      %45 = vector.broadcast %44 : f32 to vector<1x1x128xf32>
      %46 = arith.addf %39, %45 : vector<1x1x128xf32>
      %c0_18 = arith.constant 0 : index
      %c0_19 = arith.constant 0 : index
      %c0_20 = arith.constant 0 : index
      %47 = vector.load %arg4[%c0_18, %c0_19, %c0_20] : memref<1x1x128xf32, #tpu.memory_space<vmem>>, vector<1x1x128xf32>
      tpu.vector_store %arg4[%c0_18, %c0_19, %c0_20], %46 {strides = array<i32>} : memref<1x1x128xf32, #tpu.memory_space<vmem>>, vector<1x1x128xf32>,
    } else {
    }
    return
  }
  func.func @transform_0(%arg0: i32, %arg1: i32) -> (i32, i32, i32) {
    %c1_i32 = arith.constant 1 : i32
    %0 = arith.muli %arg0, %c1_i32 : i32
    %1 = arith.addi %0, %arg1 : i32
    %c0_i32 = arith.constant 0 : i32
    %2 = arith.minsi %1, %c0_i32 : i32
    %c0_i32_0 = arith.constant 0 : i32
    %c0_i32_1 = arith.constant 0 : i32
    %c0_i32_2 = arith.constant 0 : i32
    return %c0_i32_0, %2, %c0_i32_1 : i32, i32, i32
  }
  func.func @transform_1(%arg0: i32, %arg1: i32) -> (i32, i32) {
    %c1_i32 = arith.constant 1 : i32
    %0 = arith.muli %arg0, %c1_i32 : i32
    %1 = arith.addi %0, %arg1 : i32
    %c0_i32 = arith.constant 0 : i32
    %2 = arith.minsi %1, %c0_i32 : i32
    %c0_i32_0 = arith.constant 0 : i32
    %c0_i32_1 = arith.constant 0 : i32
    return %2, %c0_i32_0 : i32, i32
  }
  func.func @transform_2(%arg0: i32, %arg1: i32) -> (i32, i32, i32) {
    %c0_i32 = arith.constant 0 : i32
    %c0_i32_0 = arith.constant 0 : i32
    %c0_i32_1 = arith.constant 0 : i32
    return %arg0, %c0_i32, %c0_i32_0 : i32, i32, i32
  }
}

</mosaic_0001>

<llo_original>
// kernel: tpu_custom_call.1
$region0: #{tpu_custom_call.1}
  #allocation0 [shape = 'u32[]', space=smem, size = 0x4, offset = 0x4, fixed_abs, tag = 'smem constant byte address 0x4 - core index']
  #allocation1 [shape = 'u32[72,128]{1,0:T(1,128)}', space=vmem, size = 0x9000, scoped, tag = 'internal scratch']
  #allocation2 [shape = 'f32[1,128]{1,0:T(1,128)}', space=vmem, size = 0x200, scoped, tag = 'scratch operand']
  %s0 = inlined_call_operand.hbm [shape: f32[2,1,128], index: 0, kind: input, shape index: {}]
  %s1 = inlined_call_operand.hbm [shape: s32[1,128], index: 1, kind: input, shape index: {}]
  %s2 = inlined_call_operand.hbm [shape: f32[2,1,128], index: 2, kind: output, shape index: {}]
  %s3 = sld [smem:[#allocation0]]
  $region65: #{tpu_custom_call.1} parent=0
    _
  %s5 = ssub.s32 1, %s3
  %s6 = scalar_select 0, %s5, %s3
  $region1: #{tpu_custom_call.1} parent=0
    #allocation3 [shape = 'u8[2048]{0}', space=vmem, size = 0x800, scoped, tag = 'input window, operand 0']
    #allocation4 [shape = 's32[2]{0}', space=sflag, size = 0x8, scoped, tag = 'scoped memory for tpu_custom_call.1']
    #allocation5 [shape = 's32[2]{0}', space=sflag, size = 0x8, scoped, tag = 'scoped memory for tpu_custom_call.1']
    #allocation6 [shape = 'u8[1024]{0}', space=vmem, size = 0x400, scoped, tag = 'input window, operand 1']
    #allocation7 [shape = 's32[2]{0}', space=sflag, size = 0x8, scoped, tag = 'scoped memory for tpu_custom_call.1']
    #allocation8 [shape = 'u8[1024]{0}', space=vmem, size = 0x400, scoped, tag = 'output window, operand 0']
    %7 = vsyncpa [#allocation4], 0
    %s8 = scalar_lea.sflag [#allocation4], 1
    %9 = vsyncpa %s8, 0
    %10 = vsyncpa [#allocation7], 0
    %s11 = scalar_lea.sflag [#allocation7], 1
    %12 = vsyncpa %s11, 0
    %13 = vsyncpa [#allocation5], 0
    %s14 = scalar_lea.sflag [#allocation5], 1
    %15 = vsyncpa %s14, 0
    loop: start=0, step=1, limit=4
    $region2: #{tpu_custom_call.1} parent=1 // loop_pre_header
      _
    $region3: #{tpu_custom_call.1} parent=1 // loop_header
      %s17 = sphi 0, %s21
      %p18 = scmp.ge.s32.totalorder %s17, 4
      %s24 = sphi 0, %s36
      %s25 = sphi 0, %s32
      %s26 = sphi 0, %s24
      %s27 = sphi 0, %s25
      %s28 = sphi 0, %s26
      %s29 = sphi 0, %s27
      %s45 = sphi 0, %s47
      %s48 = sphi 0, %s45
      %s49 = sphi 0, %s48
      %s65 = sphi 0, %s49
      %s77 = sphi 0, %s79
      %s80 = sphi 0, %s77
      %s81 = sphi 0, %s80
      %s97 = sphi 0, %s81
      %s103 = sphi 0, %s105
      %s106 = sphi 0, %s103
      %s107 = sphi 0, %s106
      %s123 = sphi 0, %s107
    $region4: #{tpu_custom_call.1} parent=1 // loop_header_branch
      %20 = sbr.rel (%p18) target = $region8
    $region5: #{tpu_custom_call.1} parent=1 // loop_body
      %s22 = ssub.s32 %s17, 1
      %s23 = ssub.s32 %s17, 2
      %s30 = sadd.s32 1, %s25
      %p31 = scmp.ge.s32.totalorder %s30, 1
      %s32 = scalar_select %p31, 0, %s30
      %s33 = sadd.s32 1, %s24
      %s34 = scalar_select %p31, %s33, %s24
      %p35 = scmp.ge.s32.totalorder %s34, 2
      %s36 = scalar_select %p35, 0, %s34
      %s37 = sadd.s32 %s24, %s25
      %p38 = scmp.lt.s32.totalorder %s37, 0
      %s39 = scalar_select %p38, %s37, 0
      %s40 = sadd.s32 %s36, %s32
      %p41 = scmp.lt.s32.totalorder %s40, 0
      %s42 = scalar_select %p41, %s40, 0
      %s43 = ssub.s32 %s39, %s42
      %p44 = scmp.eq.s32.totalorder %s43, 0
      %s46 = sadd.s32 %s45, 1
      %s47 = scalar_select %p44, %s45, %s46
      %p50 = pneg %p44
      %p51 = scmp.eq.s32.totalorder %s17, 1
      %p52 = por %p50, %p51
      %p53 = scmp.ne.s32.totalorder %s45, %s48
      %p54 = scmp.eq.s32.totalorder %s17, 0
      %p55 = por %p53, %p54
      %p56 = scmp.ne.s32.totalorder %s45, %s48
      %p57 = scmp.eq.s32.totalorder %s22, 1
      %p58 = por %p56, %p57
      %p59 = scmp.ne.s32.totalorder %s48, %s49
      %p60 = scmp.eq.s32.totalorder %s22, 0
      %p61 = por %p59, %p60
      %p62 = scmp.ne.s32.totalorder %s48, %s49
      %p63 = scmp.eq.s32.totalorder %s23, 1
      %p64 = por %p62, %p63
      %p66 = scmp.ne.s32.totalorder %s49, %s65
      %p67 = scmp.eq.s32.totalorder %s23, 0
      %p68 = por %p66, %p67
      %s69 = sadd.s32 %s24, %s25
      %p70 = scmp.lt.s32.totalorder %s69, 0
      %s71 = scalar_select %p70, %s69, 0
      %s72 = sadd.s32 %s36, %s32
      %p73 = scmp.lt.s32.totalorder %s72, 0
      %s74 = scalar_select %p73, %s72, 0
      %s75 = ssub.s32 %s71, %s74
      %p76 = scmp.eq.s32.totalorder %s75, 0
      %s78 = sadd.s32 %s77, 1
      %s79 = scalar_select %p76, %s77, %s78
      %p82 = pneg %p76
      %p83 = scmp.eq.s32.totalorder %s17, 1
      %p84 = por %p82, %p83
      %p85 = scmp.ne.s32.totalorder %s77, %s80
      %p86 = scmp.eq.s32.totalorder %s17, 0
      %p87 = por %p85, %p86
      %p88 = scmp.ne.s32.totalorder %s77, %s80
      %p89 = scmp.eq.s32.totalorder %s22, 1
      %p90 = por %p88, %p89
      %p91 = scmp.ne.s32.totalorder %s80, %s81
      %p92 = scmp.eq.s32.totalorder %s22, 0
      %p93 = por %p91, %p92
      %p94 = scmp.ne.s32.totalorder %s80, %s81
      %p95 = scmp.eq.s32.totalorder %s23, 1
      %p96 = por %p94, %p95
      %p98 = scmp.ne.s32.totalorder %s81, %s97
      %p99 = scmp.eq.s32.totalorder %s23, 0
      %p100 = por %p98, %p99
      %s101 = ssub.s32 %s24, %s36
      %p102 = scmp.eq.s32.totalorder %s101, 0
      %s104 = sadd.s32 %s103, 1
      %s105 = scalar_select %p102, %s103, %s104
      %p108 = pneg %p102
      %p109 = scmp.eq.s32.totalorder %s17, 1
      %p110 = por %p108, %p109
      %p111 = scmp.ne.s32.totalorder %s103, %s106
      %p112 = scmp.eq.s32.totalorder %s17, 0
      %p113 = por %p111, %p112
      %p114 = scmp.ne.s32.totalorder %s103, %s106
      %p115 = scmp.eq.s32.totalorder %s22, 1
      %p116 = por %p114, %p115
      %p117 = scmp.ne.s32.totalorder %s106, %s107
      %p118 = scmp.eq.s32.totalorder %s22, 0
      %p119 = por %p117, %p118
      %p120 = scmp.ne.s32.totalorder %s106, %s107
      %p121 = scmp.eq.s32.totalorder %s23, 1
      %p122 = por %p120, %p121
      %p124 = scmp.ne.s32.totalorder %s107, %s123
      %p125 = scmp.eq.s32.totalorder %s23, 0
      %p126 = por %p124, %p125
      %p127 = scmp.le.s32.totalorder 1, %s17
      %p128 = scmp.lt.s32.totalorder %s17, 3
      %p129 = pnand %p127, %p128
      %p130 = pneg %p129
      // Predicated region
      $region9: #{tpu_custom_call.1} parent=5 // pred_check
        _
      $region10: #{tpu_custom_call.1} parent=5 // pred_check_branch
        %132 = sbr.rel (%p129) target = $region12
      $region11: #{tpu_custom_call.1} parent=5 // pred_region
        %s133 = ssub.s32 %s17, 1
      $region12: #{tpu_custom_call.1} parent=5 // pred_fallthru
        _
      %p134 = scmp.lt.s32.totalorder %s17, 2
      // Predicated region
      $region13: #{tpu_custom_call.1} parent=5 // pred_check
        %p135 = pneg %p134
      $region14: #{tpu_custom_call.1} parent=5 // pred_check_branch
        %137 = sbr.rel (%p135) target = $region16
      $region15: #{tpu_custom_call.1} parent=5 // pred_region
        // Predicated region
        $region17: #{tpu_custom_call.1} parent=15 // pred_check
          %p138 = pneg %p55
        $region18: #{tpu_custom_call.1} parent=15 // pred_check_branch
          %140 = sbr.rel (%p138) target = $region20
        $region19: #{tpu_custom_call.1} parent=15 // pred_region
          %s141 = sand.u32 %s45, 1
          %s142 = scalar_lea.sflag [#allocation4], %s141
          %s143 = sand.u32 %s45, 1
          %s144 = smul.addr %s143, 2
          %s145 = scalar_lea.vmem [#allocation3], %s144
          %s146 = sadd.s32 %s24, %s25
          %p147 = scmp.lt.s32.totalorder %s146, 0
          %s148 = scalar_select %p147, %s146, 0
          %150 = vsyncadd %s142, 0
          %s151 = scalar_lea.hbm %s0, %s148
          %s152 = sshll.u32 %s151, 4
          %s153 = int_to_ptr.hbm [resolvable:$true] %s152
          %s154 = sshll.u32 %s145, 4
          %s155 = int_to_ptr.vmem [resolvable:$true] %s154
          %160 = dma.hbm_to_vmem [thread:$0]  %s153, 32, %s155, %s142, 16, 16, 1
        $region20: #{tpu_custom_call.1} parent=15 // pred_fallthru
          _
        // Predicated region
        $region21: #{tpu_custom_call.1} parent=15 // pred_check
          %p161 = pneg %p87
        $region22: #{tpu_custom_call.1} parent=15 // pred_check_branch
          %163 = sbr.rel (%p161) target = $region24
        $region23: #{tpu_custom_call.1} parent=15 // pred_region
          %s164 = sand.u32 %s77, 1
          %s165 = scalar_lea.sflag [#allocation7], %s164
          %s166 = sand.u32 %s77, 1
          %s167 = scalar_lea.vmem [#allocation6], %s166
          %s168 = sadd.s32 %s24, %s25
          %p169 = scmp.lt.s32.totalorder %s168, 0
          %s170 = scalar_select %p169, %s168, 0
          %172 = vsyncadd %s165, 0
          %s173 = scalar_lea.hbm %s1, %s170
          %s175 = sshll.u32 %s173, 4
          %s176 = int_to_ptr.hbm [resolvable:$true] %s175
          %s177 = sshll.u32 %s167, 4
          %s178 = int_to_ptr.vmem [resolvable:$true] %s177
          %180 = dma.hbm_to_vmem [thread:$0]  %s176, 16, %s178, %s165
        $region24: #{tpu_custom_call.1} parent=15 // pred_fallthru
          _
      $region16: #{tpu_custom_call.1} parent=5 // pred_fallthru
        _
      %p181 = scmp.le.s32.totalorder 1, %s17
      %p182 = scmp.lt.s32.totalorder %s17, 3
      %p183 = pnand %p181, %p182
      %p184 = pneg %p183
      // Predicated region
      $region25: #{tpu_custom_call.1} parent=5 // pred_check
        _
      $region26: #{tpu_custom_call.1} parent=5 // pred_check_branch
        %186 = sbr.rel (%p183) target = $region28
      $region27: #{tpu_custom_call.1} parent=5 // pred_region
        %s187 = ssub.s32 %s17, 1
        %s188 = sand.u32 %s48, 1
        %s189 = scalar_lea.sflag [#allocation4], %s188
        %s190 = sand.u32 %s48, 1
        %s191 = smul.addr %s190, 2
        %s192 = scalar_lea.vmem [#allocation3], %s191
        // Predicated region
        $region29: #{tpu_custom_call.1} parent=27 // pred_check
          %p193 = pneg %p61
        $region30: #{tpu_custom_call.1} parent=27 // pred_check_branch
          %195 = sbr.rel (%p193) target = $region32
        $region31: #{tpu_custom_call.1} parent=27 // pred_region
          %197 = dma.done %s189, 32
        $region32: #{tpu_custom_call.1} parent=27 // pred_fallthru
          _
        %s198 = sand.u32 %s80, 1
        %s199 = scalar_lea.sflag [#allocation7], %s198
        %s200 = sand.u32 %s80, 1
        %s201 = scalar_lea.vmem [#allocation6], %s200
        // Predicated region
        $region33: #{tpu_custom_call.1} parent=27 // pred_check
          %p202 = pneg %p93
        $region34: #{tpu_custom_call.1} parent=27 // pred_check_branch
          %204 = sbr.rel (%p202) target = $region36
        $region35: #{tpu_custom_call.1} parent=27 // pred_region
          %206 = dma.done %s199, 16
        $region36: #{tpu_custom_call.1} parent=27 // pred_fallthru
          _
        %s207 = sand.u32 %s48, 1
        %s208 = scalar_lea.sflag [#allocation4], %s207
        %s209 = sand.u32 %s48, 1
        %s210 = smul.addr %s209, 2
        %s211 = scalar_lea.vmem [#allocation3], %s210
        %p212 = pneg %p61
        %p213 = pneg %p58
        %s214 = sand.u32 %s80, 1
        %s215 = scalar_lea.sflag [#allocation7], %s214
        %s216 = sand.u32 %s80, 1
        %s217 = scalar_lea.vmem [#allocation6], %s216
        %p218 = pneg %p93
        %p219 = pneg %p90
        %p220 = pneg %p119
        %p221 = pneg %p116
        %s222 = sand.u32 %s106, 1
        %s223 = scalar_lea.sflag [#allocation5], %s222
        %s224 = sand.u32 %s106, 1
        %s225 = scalar_lea.vmem [#allocation8], %s224
        %s226 = sadd.s32 %s26, %s27
        %p227 = scmp.lt.s32.totalorder %s226, 0
        %s228 = scalar_select %p227, %s226, 0
        %s229 = sadd.s32 %s26, %s27
        %p230 = scmp.lt.s32.totalorder %s229, 0
        %s231 = scalar_select %p230, %s229, 0
        %p232 = scmp.eq.s32.totalorder %s27, 0
        // Predicated region
        $region37: #{tpu_custom_call.1} parent=27 // pred_check
          %p233 = pneg %p232
        $region38: #{tpu_custom_call.1} parent=27 // pred_check_branch
          %235 = sbr.rel (%p233) target = $region40
        $region39: #{tpu_custom_call.1} parent=27 // pred_region
          %236 = vst [vmem:[#allocation2] sm:$0x1] 0.0
        $region40: #{tpu_custom_call.1} parent=27 // pred_fallthru
          _
        %v237 = vld [vmem:[%s192] sm:$0x1]
        %s238 = scalar_lea.vmem %s192, 1 [#allocation3]
        %v239 = vld [vmem:[%s238] sm:$0x1]
        %v240 = vld [vmem:[%s201] sm:$0x1]
        %v241 = vmax.f32 %v237, %v239
        %v242 = vsub.f32 %v237, %v241
        %v243 = vmul.f32 %v242, 1.442695
        %v244 = vpow.pop %v243
        %v245 = vsub.f32 %v239, %v241
        %v246 = vmul.f32 %v245, 1.442695
        %v247 = vpow.pop %v246
        %v248 = vadd.f32 %v244, %v247
        %v249 = vlog2.pop %v248
        %v250 = vmul.f32 %v249, 0.6931472
        %v251 = vadd.f32 %v241, %v250
        %v252 = vadd.f32 %v237, %v239
        %vm253 = vcmp.eq.s32.totalorder %v240, 1
        %v254 = vsel %vm253, %v239, %v237
        %v255 = vmul.f32 %v254, 0.75
        %v256 = vsub.f32 %v251, %v255
        %v257 = vmul.f32 %v252, 0.125
        %v258 = vsub.f32 %v256, %v257
        %s259 = sadd.s32 %s26, %s27
        %s260 = smul.u32 %s259, 128
        %s261 = sadd.s32 %s260, 128
        %p262 = scmp.gt.s32.totalorder %s261, 8
        %p263 = scmp.le.s32.totalorder %s261, 8
        // Predicated region
        $region41: #{tpu_custom_call.1} parent=27 // pred_check
          %p264 = pneg %p263
        $region42: #{tpu_custom_call.1} parent=27 // pred_check_branch
          %266 = sbr.rel (%p264) target = $region44
        $region43: #{tpu_custom_call.1} parent=27 // pred_region
          %v267 = vld [vmem:[#allocation2] sm:$0x1]
          %v268 = vadd.f32 %v267, %v258
          %269 = vst [vmem:[#allocation2] sm:$0x1] %v268
        $region44: #{tpu_custom_call.1} parent=27 // pred_fallthru
          _
        // Predicated region
        $region45: #{tpu_custom_call.1} parent=27 // pred_check
          %p270 = pneg %p262
        $region46: #{tpu_custom_call.1} parent=27 // pred_check_branch
          %272 = sbr.rel (%p270) target = $region48
        $region47: #{tpu_custom_call.1} parent=27 // pred_region
          %v273 = vlaneseq
          %v274 = vshrl.u32 %v273, 7
          %v275 = vlaneseq
          %v276 = vand.u32 %v275, 127
          %v277 = vmul.u32 %v274, 128
          %v278 = vstv %s260
          %v279 = vadd.s32 %v278, %v277
          %v280 = vadd.s32 %v279, %v276
          %v281 = vld [vmem:[#allocation2] sm:$0x1]
          %vm282 = vcmp.lt.s32.totalorder %v280, 8
          %v283 = vsel %vm282, %v258, 0.0
          %v284 = vadd.f32 %v281, %v283
          %285 = vst [vmem:[#allocation2] sm:$0x1] %v284
        $region48: #{tpu_custom_call.1} parent=27 // pred_fallthru
          _
        // Predicated region
        $region49: #{tpu_custom_call.1} parent=27 // pred_check
          %p286 = pneg %p232
        $region50: #{tpu_custom_call.1} parent=27 // pred_check_branch
          %288 = sbr.rel (%p286) target = $region52
        $region51: #{tpu_custom_call.1} parent=27 // pred_region
          %v289 = vld [vmem:[#allocation2] sm:$0x1]
          %vm290 = vcmask 1040384
          %v291 = vsel %vm290, %v289, 0.0
          %292 = vadd.xlane.f32.xlu0 %v291
          %v293 = vpop.xlane.xlu0 %292
          %v294 = vrot.slane %v293, 4
          %v295 = vadd.f32 %v293, %v294
          %v296 = vrot.slane %v295, 2
          %v297 = vadd.f32 %v295, %v296
          %v298 = vrot.slane %v297, 1
          %v299 = vadd.f32 %v297, %v298
          %s300 = vtos %v299
          %v301 = vstv %s300
          %v302 = vadd.f32 %v301, 0.0
          %303 = vst [vmem:[%s225] sm:$0x1] %v302
        $region52: #{tpu_custom_call.1} parent=27 // pred_fallthru
          _
        %s304 = sand.u32 %s106, 1
        %s305 = scalar_lea.sflag [#allocation5], %s304
        %s306 = sand.u32 %s106, 1
        %s307 = scalar_lea.vmem [#allocation8], %s306
        // Predicated region
        $region53: #{tpu_custom_call.1} parent=27 // pred_check
          %p308 = pneg %p116
        $region54: #{tpu_custom_call.1} parent=27 // pred_check_branch
          %310 = sbr.rel (%p308) target = $region56
        $region55: #{tpu_custom_call.1} parent=27 // pred_region
          %312 = vsyncadd %s305, 0
          %s313 = scalar_lea.hbm %s2, %s26
          %s315 = sshll.u32 %s307, 4
          %s316 = int_to_ptr.vmem [resolvable:$true] %s315
          %s317 = sshll.u32 %s313, 4
          %s318 = int_to_ptr.hbm [resolvable:$true] %s317
          %320 = dma.vmem_to_hbm [thread:$0]  %s316, 16, %s318, %s305
        $region56: #{tpu_custom_call.1} parent=27 // pred_fallthru
          _
      $region28: #{tpu_custom_call.1} parent=5 // pred_fallthru
        _
      %p321 = scmp.le.s32.totalorder 2, %s17
      // Predicated region
      $region57: #{tpu_custom_call.1} parent=5 // pred_check
        %p322 = pneg %p321
      $region58: #{tpu_custom_call.1} parent=5 // pred_check_branch
        %324 = sbr.rel (%p322) target = $region60
      $region59: #{tpu_custom_call.1} parent=5 // pred_region
        %s325 = ssub.s32 %s17, 2
        // Predicated region
        $region61: #{tpu_custom_call.1} parent=59 // pred_check
          %p326 = pneg %p122
        $region62: #{tpu_custom_call.1} parent=59 // pred_check_branch
          %328 = sbr.rel (%p326) target = $region64
        $region63: #{tpu_custom_call.1} parent=59 // pred_region
          %s329 = sand.u32 %s107, 1
          %s330 = scalar_lea.sflag [#allocation5], %s329
          %s331 = sand.u32 %s107, 1
          %s332 = scalar_lea.vmem [#allocation8], %s331
          %334 = dma.done %s330, 16
        $region64: #{tpu_custom_call.1} parent=59 // pred_fallthru
          _
      $region60: #{tpu_custom_call.1} parent=5 // pred_fallthru
        _
    $region6: #{tpu_custom_call.1} parent=1 // loop_footer
      %s21 = sadd.s32 1, %s17
    $region7: #{tpu_custom_call.1} parent=1 // loop_footer_branch
      %16 = sbr.rel target = $region3
    $region8: #{tpu_custom_call.1} parent=1 // loop_exit
      _
    %335 = vsyncpa [#allocation4], 1
    %s336 = scalar_lea.sflag [#allocation4], 1
    %337 = vsyncpa %s336, 1
    %338 = vsyncpa [#allocation7], 1
    %s339 = scalar_lea.sflag [#allocation7], 1
    %340 = vsyncpa %s339, 1
    %341 = vsyncpa [#allocation5], 1
    %s342 = scalar_lea.sflag [#allocation5], 1
    %343 = vsyncpa %s342, 1

</llo_original>
